<compile_context>
chip_gen: v7x
topology: tpu7x:2x2x1
jax: 0.10.0
libtpu: 0.0.40
codegen_flags: <defaults>
</compile_context>

<pallas_src>
import math

import jax
import jax.numpy as jnp
from jax.experimental import pallas as pl
from jax.experimental.pallas import tpu as pltpu


def _cdiv(a, b):
    return -(-a // b)


def _dwpw_kernel(x_ref, halo_ref, wd_ref, wp_ref, b_ref, o_ref, dw_ref):
    # x_ref   : (R, Lt)   activation tile; R = b_blk*c_pad rows (sublanes)
    # halo_ref: (1, R, 2) halo columns: [...,0] = x at l=-1, [...,1] = x at l=Lt
    # wd_ref  : (R, 3)    depthwise taps, tiled over the batch block
    # wp_ref  : (R, R)    block-diagonal pointwise weights (b_blk copies of Wp)
    # b_ref   : (R, 1)    fused bias (Wp@bd + bp), tiled over the batch block
    # o_ref   : (R, Lt)   output tile
    # dw_ref  : (R, Lt)   f32 scratch holding the depthwise-stage result
    R, Lt = x_ref.shape

    x = x_ref[...]                                       # (R, Lt)
    wd = wd_ref[...]                                     # (R, 3)
    w0, w1, w2 = wd[:, 0:1], wd[:, 1:2], wd[:, 2:3]      # (R, 1) each
    halo = halo_ref[...]                                 # (1, R, 2)
    left, right = halo[0, :, 0:1], halo[0, :, 1:2]       # value at l=-1 / l=Lt

    # ---- depthwise k=3 stage, whole slab at once (XLU rolls + VPU FMA) ------
    if Lt > 1:
        x_prev = pltpu.roll(x, 1, axis=1)        # x_prev[:, l] = x[:, l-1] (col 0 wraps)
        x_next = pltpu.roll(x, Lt - 1, axis=1)   # x_next[:, l] = x[:, l+1] (col Lt-1 wraps)
        dw_ref[...] = (w0 * x_prev + w1 * x + w2 * x_next).astype(dw_ref.dtype)
        # narrow boundary fix-up: rewrite only the two edge lane columns with
        # the pre-gathered halo values (no full-slab masks / selects).
        dw_ref[:, 0:1] = (w0 * left + w1 * x[:, 0:1]
                          + w2 * x[:, 1:2]).astype(dw_ref.dtype)
        dw_ref[:, Lt - 1:Lt] = (w0 * x[:, Lt - 2:Lt - 1] + w1 * x[:, Lt - 1:Lt]
                                + w2 * right).astype(dw_ref.dtype)
    else:
        dw_ref[...] = (w0 * left + w1 * x + w2 * right).astype(dw_ref.dtype)

    # ---- pointwise 1x1 conv: one block-diagonal channel-mix matmul (MXU) ----
    out = jnp.dot(wp_ref[...], dw_ref[...],
                  preferred_element_type=jnp.float32) + b_ref[...]
    o_ref[...] = out.astype(o_ref.dtype)


def depthwise_conv(x, w_depth, b_depth, w_point, b_point, *, max_l_tile=2048):
    """Depthwise(k=3, p=1, groups=C) then pointwise(k=1) Conv1d.

    x: (N, C, L).  Weights use PyTorch shapes:
      w_depth (C,1,3), b_depth (C,), w_point (C,C,1), b_point (C,).
    Returns (N, C, L).
    """
    N, C, L = x.shape
    assert max_l_tile % 128 == 0
    itemsize = jnp.dtype(x.dtype).itemsize

    # ---- generation-aware VMEM budget ---------------------------------------
    try:
        vmem_cap = int(pltpu.get_tpu_info().vmem_capacity_bytes)
    except Exception:
        vmem_cap = 64 * 1024 * 1024                     # conservative (v7x-sized)
    # v5e/v6e (128 MiB) -> ~96 MiB usable; v7x (64 MiB) -> 48 MiB usable.
    vmem_budget = min((vmem_cap * 3) // 4, 100 * 1024 * 1024)

    # ---- channel / batch-row packing of the sublane dimension ---------------
    # The flattened (rows, L) view needs blocks whose row count is a multiple
    # of 8 sublanes.  Small C: group several batch rows per block (no waste).
    # Large non-multiple-of-8 C: pad channels instead (waste <= 7/C).
    if C % 8 == 0 or C > 64:
        c_pad = _cdiv(C, 8) * 8
        mult = 1
    else:
        c_pad = C
        mult = 8 // math.gcd(C, 8)

    def step_bytes(b_blk, l_tile):
        r = b_blk * c_pad
        slab = r * l_tile * itemsize
        consts = 2 * (r * r + 6 * r) * itemsize          # Wp_bd + taps + bias + halo
        # ~10 slabs: 2x in + 2x out (double-buffered) + dw scratch + roll /
        # elementwise / matmul intermediates.
        return 10 * slab + consts

    # ---- lane (L) tile -------------------------------------------------------
    if L <= max_l_tile and step_bytes(1, L) <= vmem_budget:
        l_tile = L                                       # single full-dim tile
    else:
        l_tile = min(max_l_tile, _cdiv(L, 128) * 128)
        while l_tile > 128 and step_bytes(1, l_tile) > vmem_budget:
            l_tile = max(128, (l_tile // 2) // 128 * 128)
    l_pad = _cdiv(L, l_tile) * l_tile
    n_t = l_pad // l_tile

    # ---- batch block: target >= ~4 MiB of in+out HBM traffic per grid step --
    per_b = 2 * c_pad * l_tile * itemsize
    b_blk = max(1, min(N, 16, max(mult, 512 // c_pad),
                       (4 * 1024 * 1024) // max(per_b, 1)))
    b_blk = _cdiv(b_blk, mult) * mult                    # keep (b_blk*C) % 8 == 0
    while b_blk > mult and step_bytes(b_blk, l_tile) > vmem_budget:
        b_blk -= mult
    n_pad = _cdiv(N, b_blk) * b_blk                      # pad N, don't shrink b_blk
    n_bb = n_pad // b_blk
    rows = n_pad * c_pad
    blk_rows = b_blk * c_pad

    # ---- pad + flatten to the lane-dense (rows, l_pad) view ------------------
    x_pad = x
    if n_pad != N or c_pad != C or l_pad != L:
        x_pad = jnp.pad(x, ((0, n_pad - N), (0, c_pad - C), (0, l_pad - L)))
    x2 = x_pad.reshape(rows, l_pad)                      # free: collapse leading dims

    # ---- halo columns, packed into one (n_t, rows, 2) array ------------------
    zero_col = jnp.zeros((rows, 1), x.dtype)
    left_in = x2[:, l_tile - 1:l_pad - 1:l_tile]         # (rows, n_t-1)
    right_in = x2[:, l_tile::l_tile]                     # (rows, n_t-1)
    left = jnp.concatenate([zero_col, left_in], axis=1)       # (rows, n_t)
    right = jnp.concatenate([right_in, zero_col], axis=1)     # (rows, n_t)
    halo = jnp.transpose(jnp.stack([left, right], axis=2), (1, 0, 2))  # (n_t, rows, 2)

    # ---- weights: PyTorch shapes -> kernel-friendly (channel-padded) shapes --
    wp = w_point.reshape(C, C).astype(x.dtype)
    wd_full = jnp.zeros((c_pad, 3), x.dtype).at[:C].set(w_depth.reshape(C, 3))
    wp_full = jnp.zeros((c_pad, c_pad), x.dtype).at[:C, :C].set(wp)
    b_fused = wp @ b_depth.reshape(C, 1) + b_point.reshape(C, 1)          # (C, 1)
    b_full = jnp.zeros((c_pad, 1), x.dtype).at[:C].set(b_fused)

    wd_bc = jnp.tile(wd_full, (b_blk, 1))                                 # (blk_rows, 3)
    wp_bd = jnp.kron(jnp.eye(b_blk, dtype=x.dtype), wp_full)              # (blk_rows, blk_rows)
    b_bd = jnp.tile(b_full, (b_blk, 1))                                   # (blk_rows, 1)

    out2 = pl.pallas_call(
        _dwpw_kernel,
        out_shape=jax.ShapeDtypeStruct((rows, l_pad), x.dtype),
        grid_spec=pltpu.PrefetchScalarGridSpec(
            num_scalar_prefetch=0,
            grid=(n_bb, n_t),
            in_specs=[
                pl.BlockSpec((blk_rows, l_tile), lambda i, j: (i, j)),
                pl.BlockSpec((1, blk_rows, 2), lambda i, j: (j, i, 0)),
                pl.BlockSpec((blk_rows, 3), lambda i, j: (0, 0)),
                pl.BlockSpec((blk_rows, blk_rows), lambda i, j: (0, 0)),
                pl.BlockSpec((blk_rows, 1), lambda i, j: (0, 0)),
            ],
            out_specs=pl.BlockSpec((blk_rows, l_tile), lambda i, j: (i, j)),
            scratch_shapes=[pltpu.VMEM((blk_rows, l_tile), jnp.float32)],
        ),
        compiler_params=pltpu.CompilerParams(
            dimension_semantics=("parallel", "parallel"),
            vmem_limit_bytes=int(vmem_budget)),
    )(x2, halo, wd_bc, wp_bd, b_bd)

    return out2.reshape(n_pad, c_pad, l_pad)[:N, :C, :L]


def _reference(x, w_depth, b_depth, w_point, b_point):
    # pure-JAX reference of the PyTorch forward
    N, C, L = x.shape
    wd = w_depth.reshape(C, 3)
    xp = jnp.pad(x, ((0, 0), (0, 0), (1, 1)))
    dw = (wd[None, :, 0:1] * xp[:, :, 0:L]
          + wd[None, :, 1:2] * xp[:, :, 1:L + 1]
          + wd[None, :, 2:3] * xp[:, :, 2:L + 2]
          + b_depth.reshape(1, C, 1))
    wp = w_point.reshape(C, C)
    out = jnp.einsum("oc,ncl->nol", wp, dw) + b_point.reshape(1, C, 1)
    return out


if __name__ == "__main__":
    key = jax.random.PRNGKey(0)
    N, C, L = 2, 4, 16  # batch, channels (in == out for this module), length

    k1, k2, k3, k4, k5 = jax.random.split(key, 5)
    x = jax.random.normal(k1, (N, C, L), dtype=jnp.float32)
    # PyTorch parameter shapes: depth (C,1,3) + (C,), point (C,C,1) + (C,)
    w_depth = jax.random.normal(k2, (C, 1, 3), dtype=jnp.float32) * 0.5
    b_depth = jax.random.normal(k3, (C,), dtype=jnp.float32) * 0.1
    w_point = jax.random.normal(k4, (C, C, 1), dtype=jnp.float32) * 0.5
    b_point = jax.random.normal(k5, (C,), dtype=jnp.float32) * 0.1

    # 1) basic shape (single L tile, batch folded into the sublane rows)
    out = depthwise_conv(x, w_depth, b_depth, w_point, b_point)
    out = jax.block_until_ready(out)
    ref = _reference(x, w_depth, b_depth, w_point, b_point)
    assert out.shape == (N, C, L)
    assert jnp.allclose(out, ref, atol=1e-5, rtol=1e-5), \
        float(jnp.max(jnp.abs(out - ref)))

    # 2) exercise the L-tiled + halo + padding path at small scale
    L2 = 300
    x_long = jax.random.normal(k1, (N, C, L2), dtype=jnp.float32)
    out2 = depthwise_conv(x_long, w_depth, b_depth, w_point, b_point,
                          max_l_tile=128)
    out2 = jax.block_until_ready(out2)
    ref2 = _reference(x_long, w_depth, b_depth, w_point, b_point)
    assert out2.shape == (N, C, L2)
    assert jnp.allclose(out2, ref2, atol=1e-5, rtol=1e-5), \
        float(jnp.max(jnp.abs(out2 - ref2)))

    print("KERNEL_OK")
</pallas_src>

<mosaic_0001>
module attributes {stable_mosaic.version = 11 : i64} {
  func.func @_dwpw_kernel(%arg0: i32, %arg1: i32, %arg2: memref<8x16xf32, #tpu.memory_space<vmem>>, %arg3: memref<1x8x2xf32, #tpu.memory_space<vmem>>, %arg4: memref<8x3xf32, #tpu.memory_space<vmem>>, %arg5: memref<8x8xf32, #tpu.memory_space<vmem>>, %arg6: memref<8x1xf32, #tpu.memory_space<vmem>>, %arg7: memref<8x16xf32, #tpu.memory_space<vmem>>, %arg8: memref<8x16xf32, #tpu.memory_space<vmem>>) attributes {dimension_semantics = [#tpu.dimension_semantics<parallel>, #tpu.dimension_semantics<parallel>], iteration_bounds = array<i64: 1, 1>, scalar_prefetch = 0 : i64, scratch_operands = 1 : i64, tpu.core_type = #tpu.core_type<tc>, window_params = [{transform_indices = @transform_0, window_bounds = array<i64: 8, 16>}, {transform_indices = @transform_1, window_bounds = array<i64: 1, 8, 2>}, {pipeline_mode = #tpu.pipeline_mode<synchronous>, transform_indices = @transform_2, window_bounds = array<i64: 8, 3>}, {pipeline_mode = #tpu.pipeline_mode<synchronous>, transform_indices = @transform_3, window_bounds = array<i64: 8, 8>}, {pipeline_mode = #tpu.pipeline_mode<synchronous>, transform_indices = @transform_4, window_bounds = array<i64: 8, 1>}, {transform_indices = @transform_5, window_bounds = array<i64: 8, 16>}]} {
    %c0 = arith.constant 0 : index
    %c0_0 = arith.constant 0 : index
    %0 = vector.load %arg2[%c0, %c0_0] : memref<8x16xf32, #tpu.memory_space<vmem>>, vector<8x16xf32>
    %c0_1 = arith.constant 0 : index
    %c0_2 = arith.constant 0 : index
    %1 = vector.load %arg4[%c0_1, %c0_2] : memref<8x3xf32, #tpu.memory_space<vmem>>, vector<8x3xf32>
    %2 = vector.extract_strided_slice %1 {offsets = [0, 0], sizes = [8, 1], strides = [1, 1]} : vector<8x3xf32> to vector<8x1xf32>
    %3 = vector.extract_strided_slice %1 {offsets = [0, 1], sizes = [8, 1], strides = [1, 1]} : vector<8x3xf32> to vector<8x1xf32>
    %4 = vector.extract_strided_slice %1 {offsets = [0, 2], sizes = [8, 1], strides = [1, 1]} : vector<8x3xf32> to vector<8x1xf32>
    %c0_3 = arith.constant 0 : index
    %c0_4 = arith.constant 0 : index
    %c0_5 = arith.constant 0 : index
    %5 = vector.load %arg3[%c0_3, %c0_4, %c0_5] : memref<1x8x2xf32, #tpu.memory_space<vmem>>, vector<1x8x2xf32>
    %6 = vector.extract_strided_slice %5 {offsets = [0, 0, 0], sizes = [1, 8, 1], strides = [1, 1, 1]} : vector<1x8x2xf32> to vector<1x8x1xf32>
    %7 = vector.shape_cast %6 : vector<1x8x1xf32> to vector<8x1xf32>
    %8 = vector.extract_strided_slice %5 {offsets = [0, 0, 1], sizes = [1, 8, 1], strides = [1, 1, 1]} : vector<1x8x2xf32> to vector<1x8x1xf32>
    %9 = vector.shape_cast %8 : vector<1x8x1xf32> to vector<8x1xf32>
    %c1_i32 = arith.constant 1 : i32
    %10 = tpu.dynamic_rotate %0 by %c1_i32 dim 1 : vector<8x16xf32>, i32 -> vector<8x16xf32>
    %c15_i32 = arith.constant 15 : i32
    %11 = tpu.dynamic_rotate %0 by %c15_i32 dim 1 : vector<8x16xf32>, i32 -> vector<8x16xf32>
    %12 = vector.broadcast %2 : vector<8x1xf32> to vector<8x16xf32>
    %13 = arith.mulf %12, %10 : vector<8x16xf32>
    %14 = vector.broadcast %3 : vector<8x1xf32> to vector<8x16xf32>
    %15 = arith.mulf %14, %0 : vector<8x16xf32>
    %16 = arith.addf %13, %15 : vector<8x16xf32>
    %17 = vector.broadcast %4 : vector<8x1xf32> to vector<8x16xf32>
    %18 = arith.mulf %17, %11 : vector<8x16xf32>
    %19 = arith.addf %16, %18 : vector<8x16xf32>
    %c0_6 = arith.constant 0 : index
    %c0_7 = arith.constant 0 : index
    %20 = vector.load %arg8[%c0_6, %c0_7] : memref<8x16xf32, #tpu.memory_space<vmem>>, vector<8x16xf32>
    tpu.vector_store %arg8[%c0_6, %c0_7], %19 {strides = array<i32>} : memref<8x16xf32, #tpu.memory_space<vmem>>, vector<8x16xf32>,
    %21 = arith.mulf %2, %7 : vector<8x1xf32>
    %22 = vector.extract_strided_slice %0 {offsets = [0, 0], sizes = [8, 1], strides = [1, 1]} : vector<8x16xf32> to vector<8x1xf32>
    %23 = arith.mulf %3, %22 : vector<8x1xf32>
    %24 = arith.addf %21, %23 : vector<8x1xf32>
    %25 = vector.extract_strided_slice %0 {offsets = [0, 1], sizes = [8, 1], strides = [1, 1]} : vector<8x16xf32> to vector<8x1xf32>
    %26 = arith.mulf %4, %25 : vector<8x1xf32>
    %27 = arith.addf %24, %26 : vector<8x1xf32>
    %c0_8 = arith.constant 0 : index
    %c0_9 = arith.constant 0 : index
    %28 = vector.load %arg8[%c0_8, %c0_9] : memref<8x16xf32, #tpu.memory_space<vmem>>, vector<8x1xf32>
    tpu.vector_store %arg8[%c0_8, %c0_9], %27 {strides = array<i32>} : memref<8x16xf32, #tpu.memory_space<vmem>>, vector<8x1xf32>,
    %29 = vector.extract_strided_slice %0 {offsets = [0, 14], sizes = [8, 1], strides = [1, 1]} : vector<8x16xf32> to vector<8x1xf32>
    %30 = arith.mulf %2, %29 : vector<8x1xf32>
    %31 = vector.extract_strided_slice %0 {offsets = [0, 15], sizes = [8, 1], strides = [1, 1]} : vector<8x16xf32> to vector<8x1xf32>
    %32 = arith.mulf %3, %31 : vector<8x1xf32>
    %33 = arith.addf %30, %32 : vector<8x1xf32>
    %34 = arith.mulf %4, %9 : vector<8x1xf32>
    %35 = arith.addf %33, %34 : vector<8x1xf32>
    %c0_10 = arith.constant 0 : index
    %c15 = arith.constant 15 : index
    %36 = vector.load %arg8[%c0_10, %c15] : memref<8x16xf32, #tpu.memory_space<vmem>>, vector<8x1xf32>
    tpu.vector_store %arg8[%c0_10, %c15], %35 {strides = array<i32>} : memref<8x16xf32, #tpu.memory_space<vmem>>, vector<8x1xf32>,
    %c0_11 = arith.constant 0 : index
    %c0_12 = arith.constant 0 : index
    %37 = vector.load %arg5[%c0_11, %c0_12] : memref<8x8xf32, #tpu.memory_space<vmem>>, vector<8x8xf32>
    %c0_13 = arith.constant 0 : index
    %c0_14 = arith.constant 0 : index
    %38 = vector.load %arg8[%c0_13, %c0_14] : memref<8x16xf32, #tpu.memory_space<vmem>>, vector<8x16xf32>
    %cst = arith.constant dense<0.000000e+00> : vector<8x16xf32>
    %39 = tpu.matmul %37, %38, %cst {dimension_numbers = #tpu.dot_dimension_numbers<[1], [0], [0], [1], [0, 0, 1, 1], [], []>} : vector<8x8xf32>, vector<8x16xf32>, vector<8x16xf32> -> vector<8x16xf32>
    %c0_15 = arith.constant 0 : index
    %c0_16 = arith.constant 0 : index
    %40 = vector.load %arg6[%c0_15, %c0_16] : memref<8x1xf32, #tpu.memory_space<vmem>>, vector<8x1xf32>
    %41 = vector.broadcast %40 : vector<8x1xf32> to vector<8x16xf32>
    %42 = arith.addf %39, %41 : vector<8x16xf32>
    %c0_17 = arith.constant 0 : index
    %c0_18 = arith.constant 0 : index
    %43 = vector.load %arg7[%c0_17, %c0_18] : memref<8x16xf32, #tpu.memory_space<vmem>>, vector<8x16xf32>
    tpu.vector_store %arg7[%c0_17, %c0_18], %42 {strides = array<i32>} : memref<8x16xf32, #tpu.memory_space<vmem>>, vector<8x16xf32>,
    return
  }
  func.func @transform_0(%arg0: i32, %arg1: i32) -> (i32, i32) {
    %c0_i32 = arith.constant 0 : i32
    return %arg0, %arg1 : i32, i32
  }
  func.func @transform_1(%arg0: i32, %arg1: i32) -> (i32, i32, i32) {
    %c0_i32 = arith.constant 0 : i32
    %c0_i32_0 = arith.constant 0 : i32
    return %arg1, %arg0, %c0_i32 : i32, i32, i32
  }
  func.func @transform_2(%arg0: i32, %arg1: i32) -> (i32, i32) {
    %c0_i32 = arith.constant 0 : i32
    %c0_i32_0 = arith.constant 0 : i32
    %c0_i32_1 = arith.constant 0 : i32
    return %c0_i32, %c0_i32_0 : i32, i32
  }
  func.func @transform_3(%arg0: i32, %arg1: i32) -> (i32, i32) {
    %c0_i32 = arith.constant 0 : i32
    %c0_i32_0 = arith.constant 0 : i32
    %c0_i32_1 = arith.constant 0 : i32
    return %c0_i32, %c0_i32_0 : i32, i32
  }
  func.func @transform_4(%arg0: i32, %arg1: i32) -> (i32, i32) {
    %c0_i32 = arith.constant 0 : i32
    %c0_i32_0 = arith.constant 0 : i32
    %c0_i32_1 = arith.constant 0 : i32
    return %c0_i32, %c0_i32_0 : i32, i32
  }
  func.func @transform_5(%arg0: i32, %arg1: i32) -> (i32, i32) {
    %c0_i32 = arith.constant 0 : i32
    return %arg0, %arg1 : i32, i32
  }
}

</mosaic_0001>

<llo_original>
// kernel: tpu_custom_call.1
$region0: #{tpu_custom_call.1}
  #allocation0 [shape = 'u32[]', space=smem, size = 0x4, offset = 0x4, fixed_abs, tag = 'smem constant byte address 0x4 - core index']
  #allocation1 [shape = 'u32[144,128]{1,0:T(1,128)}', space=vmem, size = 0x12000, scoped, tag = 'internal scratch']
  #allocation2 [shape = 'f32[8,16]{1,0:T(8,128)}', space=vmem, size = 0x1000, scoped, tag = 'scratch operand']
  %s0 = inlined_call_operand.vmem [shape: f32[8,16], index: 0, kind: input, shape index: {}]
  %s1 = inlined_call_operand.vmem [shape: f32[1,8,2], index: 1, kind: input, shape index: {}]
  %s2 = inlined_call_operand.vmem [shape: f32[8,3], index: 2, kind: input, shape index: {}]
  %s3 = inlined_call_operand.vmem [shape: f32[8,8], index: 3, kind: input, shape index: {}]
  %s4 = inlined_call_operand.vmem [shape: f32[8,1], index: 4, kind: input, shape index: {}]
  %s5 = inlined_call_operand.hbm [shape: f32[8,16], index: 5, kind: output, shape index: {}]
  %s6 = sld [smem:[#allocation0]]
  $region30: #{tpu_custom_call.1} parent=0
    _
  %s8 = ssub.s32 1, %s6
  %s9 = scalar_select 0, %s8, %s6
  $region1: #{tpu_custom_call.1} parent=0
    #allocation3 [shape = 'u8[4096]{0}', space=vmem, size = 0x1000, scoped, tag = 'output window, operand 0, single buffered']
    #allocation4 [shape = 's32[1]{0}', space=sflag, size = 0x4, scoped, tag = 'scoped memory for tpu_custom_call.1']
    %10 = vsyncpa [#allocation4], 0
    // Predicated region
    $region2: #{tpu_custom_call.1} parent=1 // pred_check
      _
    $region3: #{tpu_custom_call.1} parent=1 // pred_check_branch
      %12 = sbr.rel (0) target = $region5
    $region4: #{tpu_custom_call.1} parent=1 // pred_region
      _
    $region5: #{tpu_custom_call.1} parent=1 // pred_fallthru
      _
    // Predicated region
    $region6: #{tpu_custom_call.1} parent=1 // pred_check
      _
    $region7: #{tpu_custom_call.1} parent=1 // pred_check_branch
      %14 = sbr.rel (0) target = $region9
    $region8: #{tpu_custom_call.1} parent=1 // pred_region
      _
    $region9: #{tpu_custom_call.1} parent=1 // pred_fallthru
      _
    // Predicated region
    $region10: #{tpu_custom_call.1} parent=1 // pred_check
      _
    $region11: #{tpu_custom_call.1} parent=1 // pred_check_branch
      %16 = sbr.rel (0) target = $region13
    $region12: #{tpu_custom_call.1} parent=1 // pred_region
      _
    $region13: #{tpu_custom_call.1} parent=1 // pred_fallthru
      _
    // Predicated region
    $region14: #{tpu_custom_call.1} parent=1 // pred_check
      _
    $region15: #{tpu_custom_call.1} parent=1 // pred_check_branch
      %18 = sbr.rel (0) target = $region17
    $region16: #{tpu_custom_call.1} parent=1 // pred_region
      _
    $region17: #{tpu_custom_call.1} parent=1 // pred_fallthru
      _
    // Predicated region
    $region18: #{tpu_custom_call.1} parent=1 // pred_check
      _
    $region19: #{tpu_custom_call.1} parent=1 // pred_check_branch
      %20 = sbr.rel (0) target = $region21
    $region20: #{tpu_custom_call.1} parent=1 // pred_region
      _
    $region21: #{tpu_custom_call.1} parent=1 // pred_fallthru
      _
    %v21 = vld [vmem:[%s0] sm:$0xff]
    %v22 = vld [vmem:[%s2] sm:$0xff]
    %v23 = vld [vmem:[%s1] sm:$0xff]
    %vm24 = vcmask 1047680
    %25 = vrot.lane.b32.xlu0 %v21, 16
    %v26 = vpop.permute.xlu0 %25
    %v27 = vsel %vm24, %v26, %v21
    %28 = vrot.lane.b32.xlu0 %v27, 16
    %v29 = vpop.permute.xlu0 %28
    %v30 = vsel %vm24, %v29, %v21
    %32 = vset.pattern.permute.xlu0 0
    %33 = vperm.xlu0 %32, %v22
    %v34 = vpop.permute.xlu0 %33
    %v36 = vmul.f32 %v34, %v30
    %37 = vset.pattern.permute.xlu0 1
    %38 = vperm.xlu0 %37, %v22
    %v39 = vpop.permute.xlu0 %38
    %v41 = vmul.f32 %v39, %v21
    %43 = vrot.lane.b32.xlu0 %v41, 15
    %v44 = vpop.permute.xlu0 %43
    %v46 = vadd.f32 %v36, %v44
    %47 = vset.pattern.permute.xlu0 2
    %48 = vperm.xlu0 %47, %v22
    %v49 = vpop.permute.xlu0 %48
    %v51 = vmul.f32 %v49, %v30
    %53 = vrot.lane.b32.xlu0 %v51, 14
    %v54 = vpop.permute.xlu0 %53
    %v56 = vadd.f32 %v46, %v54
    %58 = vrot.lane.b32.xlu0 %v56, 113
    %v59 = vpop.permute.xlu0 %58
    %vm61 = vcmask 130048
    %62 = vst.msk [vmem:[#allocation2] sm:$0xff] %vm61, %v59
    %v63 = vmul.f32 %v22, %v23
    %65 = vrot.lane.b32.xlu0 %v21, 1
    %v66 = vpop.permute.xlu0 %65
    %v68 = vmul.f32 %v22, %v66
    %70 = vrot.lane.b32.xlu0 %v68, 127
    %v71 = vpop.permute.xlu0 %70
    %v73 = vadd.f32 %v63, %v71
    %74 = vrot.lane.b32.xlu0 %v68, 126
    %v75 = vpop.permute.xlu0 %74
    %v77 = vadd.f32 %v73, %v75
    %vm78 = vcmask 7168
    %79 = vst.msk [vmem:[#allocation2] sm:$0xff] %vm78, %v77
    %80 = vrot.lane.b32.xlu0 %v21, 114
    %v81 = vpop.permute.xlu0 %80
    %v83 = vmul.f32 %v22, %v81
    %85 = vrot.lane.b32.xlu0 %v83, 127
    %v86 = vpop.permute.xlu0 %85
    %v88 = vadd.f32 %v83, %v86
    %90 = vrot.lane.b32.xlu0 %v23, 1
    %v91 = vpop.permute.xlu0 %90
    %v93 = vmul.f32 %v22, %v91
    %95 = vrot.lane.b32.xlu0 %v93, 126
    %v96 = vpop.permute.xlu0 %95
    %v98 = vadd.f32 %v88, %v96
    %100 = vrot.lane.b32.xlu0 %v98, 15
    %v101 = vpop.permute.xlu0 %100
    %vm103 = vcmask 130168
    %104 = vst.msk [vmem:[#allocation2] sm:$0xff] %vm103, %v101
    %v105 = vld [vmem:[%s3] sm:$0xff]
    %v106 = vld [vmem:[#allocation2] sm:$0xff]
    %v107 = vld [vmem:[%s4] sm:$0xff]
    %109 = vset.pattern.permute.xlu0 0
    %110 = vperm.xlu0 %109, %v107
    %v111 = vpop.permute.xlu0 %110
    %vm113 = vcmask 64512
    %v115 = vsel %vm113, %v105, 0
    %117 = vmatprep.subr.mxu0 0.0
    %118 = vmatpush1.msra.mxu0 %v106
    %119 = vmatprep.subr.mxu0 0.0
    %120 = vmatpush1.msra.mxu0 0.0
    %121 = vmatprep.subr.mxu0 0.0
    %122 = vmatpush1.msra.mxu0 0.0
    %123 = vmatprep.subr.mxu0 0.0
    %124 = vmatpush1.msra.mxu0 0.0
    %125 = vmatprep.subr.mxu0 0.0
    %126 = vmatpush1.msra.mxu0 0.0
    %127 = vmatprep.subr.mxu0 0.0
    %128 = vmatpush1.msra.mxu0 0.0
    %129 = vmatprep.subr.mxu0 0.0
    %130 = vmatpush1.msra.mxu0 0.0
    %131 = vmatprep.subr.mxu0 0.0
    %132 = vmatpush1.msra.mxu0 0.0
    %133 = vmatprep.subr.mxu0 0.0
    %134 = vmatpush1.msra.mxu0 0.0
    %135 = vmatprep.subr.mxu0 0.0
    %136 = vmatpush1.msra.mxu0 0.0
    %137 = vmatprep.subr.mxu0 0.0
    %138 = vmatpush1.msra.mxu0 0.0
    %139 = vmatprep.subr.mxu0 0.0
    %140 = vmatpush1.msra.mxu0 0.0
    %141 = vmatprep.subr.mxu0 0.0
    %142 = vmatpush1.msra.mxu0 0.0
    %143 = vmatprep.subr.mxu0 0.0
    %144 = vmatpush1.msra.mxu0 0.0
    %145 = vmatprep.subr.mxu0 0.0
    %146 = vmatpush1.msra.mxu0 0.0
    %147 = vmatprep.subr.mxu0 0.0
    %148 = vmatpush1.msra.mxu0 0.0
    %149 = vmatprep.subr.mxu0 0.0
    %150 = vmatpush1.msra.mxu0 0.0
    %151 = vmatprep.subr.mxu0 0.0
    %152 = vmatpush1.msra.mxu0 0.0
    %153 = vmatprep.subr.mxu0 0.0
    %154 = vmatpush1.msra.mxu0 0.0
    %155 = vmatprep.subr.mxu0 0.0
    %156 = vmatpush1.msra.mxu0 0.0
    %157 = vmatprep.subr.mxu0 0.0
    %158 = vmatpush1.msra.mxu0 0.0
    %159 = vmatprep.subr.mxu0 0.0
    %160 = vmatpush1.msra.mxu0 0.0
    %161 = vmatprep.subr.mxu0 0.0
    %162 = vmatpush1.msra.mxu0 0.0
    %163 = vmatprep.subr.mxu0 0.0
    %164 = vmatpush1.msra.mxu0 0.0
    %165 = vmatprep.subr.mxu0 0.0
    %166 = vmatpush1.msra.mxu0 0.0
    %167 = vmatprep.subr.mxu0 0.0
    %168 = vmatpush1.msra.mxu0 0.0
    %169 = vmatprep.subr.mxu0 0.0
    %170 = vmatpush1.msra.mxu0 0.0
    %171 = vmatprep.subr.mxu0 0.0
    %172 = vmatpush1.msra.mxu0 0.0
    %173 = vmatprep.subr.mxu0 0.0
    %174 = vmatpush1.msra.mxu0 0.0
    %175 = vmatprep.subr.mxu0 0.0
    %176 = vmatpush1.msra.mxu0 0.0
    %177 = vmatprep.subr.mxu0 0.0
    %178 = vmatpush1.msra.mxu0 0.0
    %179 = vmatprep.subr.mxu0 0.0
    %180 = vmatpush1.msra.mxu0 0.0
    %181 = vmatprep.mubr.f32.mxu0 0.0
    %182 = vmatmul.mubr.f32.gmra.mrb[0].mxu0 %v115
    %v183 = vpop.f32.mrb[0].mxu0
    %v184 = vadd.f32 %v111, %v183
    %v185 = vpop.f32.mrb[0].mxu0
    %186 = vdwg.mxu0
    %187 = vst.msk [vmem:[#allocation3] sm:$0xff] %vm61, %v184
    // Predicated region
    $region22: #{tpu_custom_call.1} parent=1 // pred_check
      _
    $region23: #{tpu_custom_call.1} parent=1 // pred_check_branch
      %189 = sbr.rel (0) target = $region25
    $region24: #{tpu_custom_call.1} parent=1 // pred_region
      %s191 = ssub.s32 128, 128
      %192 = vsyncadd [#allocation4], %s191
      %s194 = sshll.u32 [#allocation3], 4
      %s195 = int_to_ptr.vmem [resolvable:$true] %s194
      %197 = dma.vmem_to_hbm [thread:$0]  %s195, 128, %s5, [#allocation4]
    $region25: #{tpu_custom_call.1} parent=1 // pred_fallthru
      _
    // Predicated region
    $region26: #{tpu_custom_call.1} parent=1 // pred_check
      _
    $region27: #{tpu_custom_call.1} parent=1 // pred_check_branch
      %199 = sbr.rel (0) target = $region29
    $region28: #{tpu_custom_call.1} parent=1 // pred_region
      %200 = dma.done [#allocation4], 128
    $region29: #{tpu_custom_call.1} parent=1 // pred_fallthru
      _
    %201 = vsyncpa [#allocation4], 1

</llo_original>
